<compile_context>
chip_gen: v6e
topology: v6e:2x2x1
jax: 0.10.0
libtpu: 0.0.40
codegen_flags: <defaults>
</compile_context>

<pallas_src>
import jax
import jax.numpy as jnp
from jax.experimental import pallas as pl
from jax.experimental.pallas import tpu as pltpu


# VMEM budget for the double-buffered input + output blocks of one grid step,
# plus the scoped-VMEM limit we request.  Safe on v5e/v6e (128 MiB physical)
# and v7x (64 MiB physical, 32 MiB default scoped).
_BLOCK_BUDGET_BYTES = 24 * 1024 * 1024
_VMEM_LIMIT_BYTES = 40 * 1024 * 1024


def _pe_kernel(freqs_ref, x_ref, o_ref):
    # freqs_ref: SMEM (F,) f32            (scalar-prefetched)
    # x_ref:     VMEM (tile_r, L) f32     (resident across the inner freq axis)
    # o_ref:     VMEM (2, tile_r, L) f32  (sin + cos slabs for one (b, freq, tile))
    k = pl.program_id(2)                  # frequency index (innermost grid axis)
    xf = x_ref[...] * freqs_ref[k]        # one multiply shared by sin and cos
    o_ref[0] = jnp.sin(xf)
    o_ref[1] = jnp.cos(xf)


def _choose_tile_r(R, L, budget_bytes=_BLOCK_BUDGET_BYTES):
    """Largest sublane tile (multiple of 8, ideally dividing R) within budget."""
    # Double-buffered f32 bytes per grid step:
    #   2*(input tile_r*L*4) + 2*(output 2*tile_r*L*4) = 24 * tile_r * L
    max_tile = budget_bytes // (24 * L)
    if R <= max_tile:
        return R                           # whole R in one block (valid for any R)
    max_tile = max(8, (max_tile // 8) * 8)
    if R % 8 == 0:
        t = max_tile
        while t >= 8:                      # prefer an exact divisor: no masked last tile
            if R % t == 0:
                return t
            t -= 8
        return 8
    return max_tile                        # masked last tile (rare, still correct)


def positional_encoding(x, num_freqs=10):
    """x: (B, C, H, W) float32 -> (B, 2*num_freqs*C, H, W) float32."""
    B, C, H, W = x.shape
    F = num_freqs
    E = C * H * W
    L = 128

    if E % L == 0:
        R = E // L
        e_pad = E
        x2 = x.reshape(B, R, L)
    else:
        # Pad the flattened per-batch slab up to a multiple of 8*128 so the
        # layout stays lane-dense with a multiple-of-8 sublane axis (avoids the
        # 8x-wasteful sublane-1 fallback and any VMEM blow-up for odd shapes).
        R = pl.cdiv(E, 8 * L) * 8
        e_pad = R * L
        x2 = jnp.pad(x.reshape(B, E), ((0, 0), (0, e_pad - E))).reshape(B, R, L)

    tile_r = _choose_tile_r(R, L)
    num_r_tiles = pl.cdiv(R, tile_r)

    freqs = (2.0 ** jnp.arange(F, dtype=jnp.float32)) * jnp.pi

    n = x.size
    cost = pl.CostEstimate(
        flops=2 * F * n,
        transcendentals=2 * F * n,
        bytes_accessed=(1 + 2 * F) * n * 4,
    )

    out = pl.pallas_call(
        _pe_kernel,
        out_shape=jax.ShapeDtypeStruct((B, 2, F, R, L), jnp.float32),
        grid_spec=pltpu.PrefetchScalarGridSpec(
            num_scalar_prefetch=1,
            grid=(B, num_r_tiles, F),      # F innermost: x tile stays in VMEM across freqs
            in_specs=[
                pl.BlockSpec(
                    (pl.Squeezed(), tile_r, L),
                    lambda b, t, k, freqs_ref: (b, t, 0),
                ),
            ],
            out_specs=pl.BlockSpec(
                (pl.Squeezed(), 2, pl.Squeezed(), tile_r, L),
                lambda b, t, k, freqs_ref: (b, 0, k, t, 0),
            ),
        ),
        compiler_params=pltpu.CompilerParams(
            dimension_semantics=("parallel", "parallel", "parallel"),
            vmem_limit_bytes=_VMEM_LIMIT_BYTES,
        ),
        cost_estimate=cost,
    )(freqs, x2)

    # (B, 2, F, R, L) -> (B, 2*F*C, H, W): a pure reshape (no transpose), since
    # R*L covers C*H*W in the original flattening order; this exactly reproduces
    # the torch.cat channel order [sin f0..f(F-1) | cos f0..f(F-1)].
    if e_pad == E:
        return out.reshape(B, 2 * F * C, H, W)
    return out.reshape(B, 2 * F, e_pad)[:, :, :E].reshape(B, 2 * F * C, H, W)


def positional_encoding_ref(x, num_freqs=10):
    freqs = (2.0 ** jnp.arange(num_freqs, dtype=jnp.float32)) * jnp.pi
    pieces = []
    for func in (jnp.sin, jnp.cos):
        for i in range(num_freqs):
            pieces.append(func(x * freqs[i]))
    return jnp.concatenate(pieces, axis=1)


if __name__ == "__main__":
    key = jax.random.PRNGKey(0)
    B, C, H, W = 2, 4, 16, 16
    # NeRF-style normalized coordinates in [-1, 1] (the module's intended input).
    x = jax.random.uniform(key, (B, C, H, W), dtype=jnp.float32,
                           minval=-1.0, maxval=1.0)

    out = jax.block_until_ready(positional_encoding(x, num_freqs=10))
    ref = positional_encoding_ref(x, num_freqs=10)

    assert out.shape == (B, 2 * 10 * C, H, W), out.shape
    # Tolerance covers f32 range-reduction differences at the highest frequency
    # (arguments up to 2**9 * pi * |x|) between Mosaic and XLA sin/cos lowerings.
    assert jnp.allclose(out, ref, atol=1e-3, rtol=1e-3), "mismatch vs reference"

    print("KERNEL_OK")
</pallas_src>

<mosaic_0001>
module attributes {stable_mosaic.version = 11 : i64} {
  func.func @_pe_kernel(%arg0: i32, %arg1: i32, %arg2: i32, %arg3: memref<10xf32, #tpu.memory_space<smem>>, %arg4: memref<1x8x128xf32, #tpu.memory_space<vmem>>, %arg5: memref<1x2x1x8x128xf32, #tpu.memory_space<vmem>>) attributes {dimension_semantics = [#tpu.dimension_semantics<parallel>, #tpu.dimension_semantics<parallel>, #tpu.dimension_semantics<parallel>], iteration_bounds = array<i64: 2, 1, 10>, scalar_prefetch = 1 : i64, scratch_operands = 0 : i64, tpu.core_type = #tpu.core_type<tc>, window_params = [{transform_indices = @transform_0, window_bounds = array<i64: 1, 8, 128>}, {transform_indices = @transform_1, window_bounds = array<i64: 1, 2, 1, 8, 128>}]} {
    %c0 = arith.constant 0 : index
    %c0_0 = arith.constant 0 : index
    %c0_1 = arith.constant 0 : index
    %0 = vector.load %arg4[%c0, %c0_0, %c0_1] : memref<1x8x128xf32, #tpu.memory_space<vmem>>, vector<1x8x128xf32>
    %1 = vector.shape_cast %0 : vector<1x8x128xf32> to vector<8x128xf32>
    %2 = arith.index_cast %arg2 : i32 to index
    %3 = memref.load %arg3[%2] : memref<10xf32, #tpu.memory_space<smem>>
    %4 = vector.broadcast %3 : f32 to vector<8x128xf32>
    %5 = arith.mulf %1, %4 : vector<8x128xf32>
    %6 = math.sin %5 : vector<8x128xf32>
    %c0_2 = arith.constant 0 : index
    %c0_3 = arith.constant 0 : index
    %c0_4 = arith.constant 0 : index
    %c0_5 = arith.constant 0 : index
    %c0_6 = arith.constant 0 : index
    %7 = vector.load %arg5[%c0_2, %c0_3, %c0_4, %c0_5, %c0_6] : memref<1x2x1x8x128xf32, #tpu.memory_space<vmem>>, vector<1x1x1x8x128xf32>
    %8 = vector.shape_cast %7 : vector<1x1x1x8x128xf32> to vector<8x128xf32>
    %9 = vector.shape_cast %6 : vector<8x128xf32> to vector<1x1x1x8x128xf32>
    tpu.vector_store %arg5[%c0_2, %c0_3, %c0_4, %c0_5, %c0_6], %9 {strides = array<i32>} : memref<1x2x1x8x128xf32, #tpu.memory_space<vmem>>, vector<1x1x1x8x128xf32>,
    %10 = math.cos %5 : vector<8x128xf32>
    %c0_7 = arith.constant 0 : index
    %c1 = arith.constant 1 : index
    %c0_8 = arith.constant 0 : index
    %c0_9 = arith.constant 0 : index
    %c0_10 = arith.constant 0 : index
    %11 = vector.load %arg5[%c0_7, %c1, %c0_8, %c0_9, %c0_10] : memref<1x2x1x8x128xf32, #tpu.memory_space<vmem>>, vector<1x1x1x8x128xf32>
    %12 = vector.shape_cast %11 : vector<1x1x1x8x128xf32> to vector<8x128xf32>
    %13 = vector.shape_cast %10 : vector<8x128xf32> to vector<1x1x1x8x128xf32>
    tpu.vector_store %arg5[%c0_7, %c1, %c0_8, %c0_9, %c0_10], %13 {strides = array<i32>} : memref<1x2x1x8x128xf32, #tpu.memory_space<vmem>>, vector<1x1x1x8x128xf32>,
    return
  }
  func.func @transform_0(%arg0: i32, %arg1: i32, %arg2: i32, %arg3: memref<10xf32, #tpu.memory_space<smem>>) -> (i32, i32, i32) {
    %c0_i32 = arith.constant 0 : i32
    %c0_i32_0 = arith.constant 0 : i32
    return %arg0, %arg1, %c0_i32 : i32, i32, i32
  }
  func.func @transform_1(%arg0: i32, %arg1: i32, %arg2: i32, %arg3: memref<10xf32, #tpu.memory_space<smem>>) -> (i32, i32, i32, i32, i32) {
    %c0_i32 = arith.constant 0 : i32
    %c0_i32_0 = arith.constant 0 : i32
    %c0_i32_1 = arith.constant 0 : i32
    return %arg0, %c0_i32, %arg2, %arg1, %c0_i32_0 : i32, i32, i32, i32, i32
  }
}

</mosaic_0001>

<llo_original>
// kernel: tpu_custom_call.1
$region0: #{tpu_custom_call.1}
  #allocation0 [shape = 'u32[]', space=smem, size = 0x4, offset = 0x4, fixed_abs, tag = 'smem constant byte address 0x4 - core index']
  #allocation1 [shape = 'u32[144,128]{1,0:T(1,128)}', space=vmem, size = 0x12000, scoped, tag = 'internal scratch']
  #allocation2 [shape = 's32[1]{0}', space=sflag, size = 0x4, scoped, tag = 'scoped memory for tpu_custom_call.1']
  #allocation3 [shape = 'u8[512]{0}', space=smem, size = 0x200, scoped, tag = 'prefetched SMEM operand 0']
  %s0 = inlined_call_operand.hbm [shape: f32[10], index: 0, kind: input, shape index: {}]
  %s1 = inlined_call_operand.hbm [shape: f32[2,8,128], index: 1, kind: input, shape index: {}]
  %s2 = inlined_call_operand.hbm [shape: f32[2,2,10,8,128], index: 2, kind: output, shape index: {}]
  %s3 = sld [smem:[#allocation0]]
  $region41: #{tpu_custom_call.1} parent=0
    _
  %s5 = ssub.s32 1, %s3
  %s6 = scalar_select 0, %s5, %s3
  %8 = dma.hbm_to_smem %s0, 16, [#allocation3], [#allocation2]
  %9 = dma.done [#allocation2], 16
  %10 = sfence
  $region1: #{tpu_custom_call.1} parent=0
    #allocation4 [shape = 'u8[8192]{0}', space=vmem, size = 0x2000, scoped, tag = 'input window, operand 1']
    #allocation5 [shape = 's32[2]{0}', space=sflag, size = 0x8, scoped, tag = 'scoped memory for tpu_custom_call.1']
    #allocation6 [shape = 's32[2]{0}', space=sflag, size = 0x8, scoped, tag = 'scoped memory for tpu_custom_call.1']
    #allocation7 [shape = 'u8[16384]{0}', space=vmem, size = 0x4000, scoped, tag = 'output window, operand 0']
    %11 = vsyncpa [#allocation5], 0
    %s12 = scalar_lea.sflag [#allocation5], 1
    %13 = vsyncpa %s12, 0
    %14 = vsyncpa [#allocation6], 0
    %s15 = scalar_lea.sflag [#allocation6], 1
    %16 = vsyncpa %s15, 0
    loop: start=0, step=1, limit=22
    $region2: #{tpu_custom_call.1} parent=1 // loop_pre_header
      _
    $region3: #{tpu_custom_call.1} parent=1 // loop_header
      %s18 = sphi 0, %s22
      %p19 = scmp.ge.s32.totalorder %s18, 22
      %s25 = sphi 0, %s44
      %s26 = sphi 0, %s40
      %s27 = sphi 0, %s36
      %s28 = sphi 0, %s25
      %s29 = sphi 0, %s26
      %s30 = sphi 0, %s27
      %s31 = sphi 0, %s28
      %s32 = sphi 0, %s29
      %s33 = sphi 0, %s30
      %s49 = sphi 0, %s51
      %s52 = sphi 0, %s49
      %s53 = sphi 0, %s52
      %s69 = sphi 0, %s53
      %s79 = sphi 0, %s81
      %s82 = sphi 0, %s79
      %s83 = sphi 0, %s82
      %s99 = sphi 0, %s83
    $region4: #{tpu_custom_call.1} parent=1 // loop_header_branch
      %21 = sbr.rel (%p19) target = $region8
    $region5: #{tpu_custom_call.1} parent=1 // loop_body
      %s23 = ssub.s32 %s18, 1
      %s24 = ssub.s32 %s18, 2
      %s34 = sadd.s32 1, %s27
      %p35 = scmp.ge.s32.totalorder %s34, 10
      %s36 = scalar_select %p35, 0, %s34
      %s37 = sadd.s32 1, %s26
      %s38 = scalar_select %p35, %s37, %s26
      %p39 = scmp.ge.s32.totalorder %s38, 1
      %s40 = scalar_select %p39, 0, %s38
      %s41 = sadd.s32 1, %s25
      %s42 = scalar_select %p39, %s41, %s25
      %p43 = scmp.ge.s32.totalorder %s42, 2
      %s44 = scalar_select %p43, 0, %s42
      %s45 = ssub.s32 %s25, %s44
      %s46 = ssub.s32 %s26, %s40
      %s47 = sor.u32 %s45, %s46
      %p48 = scmp.eq.s32.totalorder %s47, 0
      %s50 = sadd.s32 %s49, 1
      %s51 = scalar_select %p48, %s49, %s50
      %p54 = pneg %p48
      %p55 = scmp.eq.s32.totalorder %s18, 19
      %p56 = por %p54, %p55
      %p57 = scmp.ne.s32.totalorder %s49, %s52
      %p58 = scmp.eq.s32.totalorder %s18, 0
      %p59 = por %p57, %p58
      %p60 = scmp.ne.s32.totalorder %s49, %s52
      %p61 = scmp.eq.s32.totalorder %s23, 19
      %p62 = por %p60, %p61
      %p63 = scmp.ne.s32.totalorder %s52, %s53
      %p64 = scmp.eq.s32.totalorder %s23, 0
      %p65 = por %p63, %p64
      %p66 = scmp.ne.s32.totalorder %s52, %s53
      %p67 = scmp.eq.s32.totalorder %s24, 19
      %p68 = por %p66, %p67
      %p70 = scmp.ne.s32.totalorder %s53, %s69
      %p71 = scmp.eq.s32.totalorder %s24, 0
      %p72 = por %p70, %p71
      %s73 = ssub.s32 %s25, %s44
      %s74 = ssub.s32 %s27, %s36
      %s75 = sor.u32 %s73, %s74
      %s76 = ssub.s32 %s26, %s40
      %s77 = sor.u32 %s75, %s76
      %p78 = scmp.eq.s32.totalorder %s77, 0
      %s80 = sadd.s32 %s79, 1
      %s81 = scalar_select %p78, %s79, %s80
      %p84 = pneg %p78
      %p85 = scmp.eq.s32.totalorder %s18, 19
      %p86 = por %p84, %p85
      %p87 = scmp.ne.s32.totalorder %s79, %s82
      %p88 = scmp.eq.s32.totalorder %s18, 0
      %p89 = por %p87, %p88
      %p90 = scmp.ne.s32.totalorder %s79, %s82
      %p91 = scmp.eq.s32.totalorder %s23, 19
      %p92 = por %p90, %p91
      %p93 = scmp.ne.s32.totalorder %s82, %s83
      %p94 = scmp.eq.s32.totalorder %s23, 0
      %p95 = por %p93, %p94
      %p96 = scmp.ne.s32.totalorder %s82, %s83
      %p97 = scmp.eq.s32.totalorder %s24, 19
      %p98 = por %p96, %p97
      %p100 = scmp.ne.s32.totalorder %s83, %s99
      %p101 = scmp.eq.s32.totalorder %s24, 0
      %p102 = por %p100, %p101
      %p103 = scmp.le.s32.totalorder 1, %s18
      %p104 = scmp.lt.s32.totalorder %s18, 21
      %p105 = pnand %p103, %p104
      %p106 = pneg %p105
      // Predicated region
      $region9: #{tpu_custom_call.1} parent=5 // pred_check
        _
      $region10: #{tpu_custom_call.1} parent=5 // pred_check_branch
        %108 = sbr.rel (%p105) target = $region12
      $region11: #{tpu_custom_call.1} parent=5 // pred_region
        %s109 = ssub.s32 %s18, 1
      $region12: #{tpu_custom_call.1} parent=5 // pred_fallthru
        _
      %p110 = scmp.lt.s32.totalorder %s18, 20
      // Predicated region
      $region13: #{tpu_custom_call.1} parent=5 // pred_check
        %p111 = pneg %p110
      $region14: #{tpu_custom_call.1} parent=5 // pred_check_branch
        %113 = sbr.rel (%p111) target = $region16
      $region15: #{tpu_custom_call.1} parent=5 // pred_region
        // Predicated region
        $region17: #{tpu_custom_call.1} parent=15 // pred_check
          %p114 = pneg %p59
        $region18: #{tpu_custom_call.1} parent=15 // pred_check_branch
          %116 = sbr.rel (%p114) target = $region20
        $region19: #{tpu_custom_call.1} parent=15 // pred_region
          %s117 = sand.u32 %s49, 1
          %s118 = scalar_lea.sflag [#allocation5], %s117
          %s119 = sand.u32 %s49, 1
          %s120 = smul.addr %s119, 8
          %s121 = scalar_lea.vmem [#allocation4], %s120
          %s123 = ssub.s32 128, 128
          %124 = vsyncadd %s118, %s123
          %s125 = sadd.s32 %s26, %s25
          %s126 = smul.addr %s125, 128
          %s127 = scalar_lea.hbm %s1, %s126
          %s129 = sshll.u32 %s121, 4
          %s130 = int_to_ptr.vmem [resolvable:$true] %s129
          %132 = dma.hbm_to_vmem [thread:$0]  %s127, 128, %s130, %s118
        $region20: #{tpu_custom_call.1} parent=15 // pred_fallthru
          _
      $region16: #{tpu_custom_call.1} parent=5 // pred_fallthru
        _
      %p133 = scmp.le.s32.totalorder 1, %s18
      %p134 = scmp.lt.s32.totalorder %s18, 21
      %p135 = pnand %p133, %p134
      %p136 = pneg %p135
      // Predicated region
      $region21: #{tpu_custom_call.1} parent=5 // pred_check
        _
      $region22: #{tpu_custom_call.1} parent=5 // pred_check_branch
        %138 = sbr.rel (%p135) target = $region24
      $region23: #{tpu_custom_call.1} parent=5 // pred_region
        %s139 = ssub.s32 %s18, 1
        %s140 = sand.u32 %s52, 1
        %s141 = scalar_lea.sflag [#allocation5], %s140
        %s142 = sand.u32 %s52, 1
        %s143 = smul.addr %s142, 8
        %s144 = scalar_lea.vmem [#allocation4], %s143
        // Predicated region
        $region25: #{tpu_custom_call.1} parent=23 // pred_check
          %p145 = pneg %p65
        $region26: #{tpu_custom_call.1} parent=23 // pred_check_branch
          %147 = sbr.rel (%p145) target = $region28
        $region27: #{tpu_custom_call.1} parent=23 // pred_region
          %148 = dma.done %s141, 128
        $region28: #{tpu_custom_call.1} parent=23 // pred_fallthru
          _
        %s149 = sand.u32 %s52, 1
        %s150 = scalar_lea.sflag [#allocation5], %s149
        %s151 = sand.u32 %s52, 1
        %s152 = smul.addr %s151, 8
        %s153 = scalar_lea.vmem [#allocation4], %s152
        %p154 = pneg %p65
        %p155 = pneg %p62
        %p156 = pneg %p95
        %p157 = pneg %p92
        %s158 = sand.u32 %s82, 1
        %s159 = scalar_lea.sflag [#allocation6], %s158
        %s160 = sand.u32 %s82, 1
        %s161 = smul.addr %s160, 16
        %s162 = scalar_lea.vmem [#allocation7], %s161
        %v163 = vld [vmem:[%s144] sm:$0xff]
        %s164 = sld [smem:[#allocation3 + %s30]]
        %v165 = vstv %s164
        %v166 = vmul.f32 %v163, %v165
        %v167 = vand.u32 2147483647, %v166
        %vm168 = vcmp.le.f32.partialorder %v167, 0.7853982
        %vm169 = vcmp.lt.s32.totalorder %v166, 0
        %v170 = vand.u32 %v166, 2139095040
        %v171 = vshrl.u32 %v170, 23
        %v172 = vsub.s32 %v171, 127
        %v173 = vand.u32 2147483647, %v166
        %v174 = vand.u32 %v173, 8388607
        %v175 = vor.u32 %v174, 8388608
        %v176 = vsub.s32 0, %v175
        %v177 = vadd.s32 %v172, 1
        %vm178 = vcmp.gt.s32.totalorder %v177, 0
        %v179 = vsel %vm178, %v177, 0
        %v180 = vshrl.u32 %v179, 5
        %v181 = vand.u32 %v179, 31
        %v182 = vsub.s32 32, %v181
        %v183 = vshrl.u32 683565275, %v182
        %v184 = vshll.u32 683565275, %v181
        %v185 = vshrl.u32 2475754826, %v182
        %v186 = vor.u32 %v184, %v185
        %v187 = vshll.u32 2475754826, %v181
        %v188 = vshrl.u32 2131351028, %v182
        %v189 = vor.u32 %v187, %v188
        %v190 = vshll.u32 2131351028, %v181
        %v191 = vshrl.u32 2102212464, %v182
        %v192 = vor.u32 %v190, %v191
        %v193 = vshll.u32 2102212464, %v181
        %v194 = vshrl.u32 920167782, %v182
        %v195 = vor.u32 %v193, %v194
        %v196 = vshll.u32 920167782, %v181
        %v197 = vshrl.u32 1326507024, %v182
        %v198 = vor.u32 %v196, %v197
        %vm199 = vcmp.lt.s32.totalorder %v180, 1
        %vm200 = vcmp.lt.s32.totalorder %v180, 2
        %vm201 = vcmp.lt.s32.totalorder %v180, 3
        %vm202 = vcmp.lt.s32.totalorder %v180, 4
        %v203 = vsel %vm199, %v183, %v186
        %v204 = vsel %vm202, %v192, 2102212464
        %v205 = vsel %vm201, %v189, %v204
        %v206 = vsel %vm200, %v203, %v205
        %v207 = vsel %vm199, %v186, %v189
        %v208 = vsel %vm202, %v195, 920167782
        %v209 = vsel %vm201, %v192, %v208
        %v210 = vsel %vm200, %v207, %v209
        %v211 = vsel %vm199, %v189, %v192
        %v212 = vsel %vm202, %v198, 1326507024
        %v213 = vsel %vm201, %v195, %v212
        %v214 = vsel %vm200, %v211, %v213
        %v215 = vshll.u32 %v175, 8
        %v216 = vmul.u32.u64.compose %v215, %v214
        %v217 = vextract.low.u32 %v216
        %v218 = vextract.high.u32 %v216
        %v219 = vmul.u32.u64.compose %v215, %v210
        %v220 = vextract.low.u32 %v219
        %v221 = vextract.high.u32 %v219
        %v222 = vmul.u32 %v215, %v206
        %v223 = vadd.s32 %v218, %v220
        %vm224 = vc.u32 %v218, %v220
        %v225 = vadd.s32 %v221, 1
        %v226 = vsel %vm224, %v225, %v221
        %v227 = vadd.s32 %v222, %v226
        %v228 = vadd.s32 %v227, 536870912
        %v229 = vshrl.u32 %v228, 30
        %v230 = vshll.u32 %v229, 30
        %v231 = vsub.s32 %v227, %v230
        %vm232 = vcmp.lt.s32.totalorder %v231, 0
        %v233 = vsub.s32 0, %v231
        %v234 = vsel %vm232, %v233, %v231
        %v235 = vclz %v234
        %v236 = vsub.s32 %v235, 2
        %vm237 = vcmp.gt.s32.totalorder 0, %v236
        %v238 = vsel %vm237, 0, %v236
        %v239 = vsub.s32 32, %v238
        %v240 = vshll.u32 %v231, %v238
        %v241 = vshrl.u32 %v223, %v239
        %v242 = vor.u32 %v240, %v241
        %v243 = vsub.s32 4294967266, %v238
        %v244 = vadd.s32 %v243, 127
        %v245 = vshll.u32 %v244, 23
        %v246 = vor.u32 4788187, %v245
        %v247 = vand.u32 2147483647, %v246
        %v249 = vcvt.s32.f32 %v242
        %v250 = vmul.f32 %v249, %v247
        %v251 = vxor.u32 %v250, 2147483648
        %v252 = vsel %vm169, %v251, %v250
        %v253 = vsub.s32 4, %v229
        %v254 = vsel %vm169, %v253, %v229
        %v255 = vsel %vm168, %v166, %v252
        %v256 = vsel %vm168, 0, %v254
        %v257 = vcosq.f32.pop %v255
        %v258 = vsinq.f32.pop %v255
        %vm259 = vweird.f32 %v166
        %v260 = vadd.s32 %v256, 3
        %v261 = vand.u32 %v260, 3
        %vm262 = vcmp.lt.s32.totalorder %v261, 2
        %vm263 = vcmp.eq.s32.totalorder %v261, 0
        %v264 = vxor.u32 %v258, 2147483648
        %v265 = vsel %vm263, %v257, %v264
        %vm266 = vcmp.eq.s32.totalorder %v261, 2
        %v267 = vxor.u32 %v257, 2147483648
        %v268 = vsel %vm266, %v267, %v258
        %v269 = vsel %vm262, %v265, %v268
        %v270 = vsel %vm259, nan, %v269
        %271 = vst [vmem:[%s162] sm:$0xff] %v270
        %v272 = vand.u32 2147483647, %v166
        %vm273 = vcmp.le.f32.partialorder %v272, 0.7853982
        %vm274 = vcmp.lt.s32.totalorder %v166, 0
        %v275 = vand.u32 %v166, 2139095040
        %v276 = vshrl.u32 %v275, 23
        %v277 = vsub.s32 %v276, 127
        %v278 = vand.u32 2147483647, %v166
        %v279 = vand.u32 %v278, 8388607
        %v280 = vor.u32 %v279, 8388608
        %v281 = vsub.s32 0, %v280
        %v282 = vadd.s32 %v277, 1
        %vm283 = vcmp.gt.s32.totalorder %v282, 0
        %v284 = vsel %vm283, %v282, 0
        %v285 = vshrl.u32 %v284, 5
        %v286 = vand.u32 %v284, 31
        %v287 = vsub.s32 32, %v286
        %v288 = vshrl.u32 683565275, %v287
        %v289 = vshll.u32 683565275, %v286
        %v290 = vshrl.u32 2475754826, %v287
        %v291 = vor.u32 %v289, %v290
        %v292 = vshll.u32 2475754826, %v286
        %v293 = vshrl.u32 2131351028, %v287
        %v294 = vor.u32 %v292, %v293
        %v295 = vshll.u32 2131351028, %v286
        %v296 = vshrl.u32 2102212464, %v287
        %v297 = vor.u32 %v295, %v296
        %v298 = vshll.u32 2102212464, %v286
        %v299 = vshrl.u32 920167782, %v287
        %v300 = vor.u32 %v298, %v299
        %v301 = vshll.u32 920167782, %v286
        %v302 = vshrl.u32 1326507024, %v287
        %v303 = vor.u32 %v301, %v302
        %vm304 = vcmp.lt.s32.totalorder %v285, 1
        %vm305 = vcmp.lt.s32.totalorder %v285, 2
        %vm306 = vcmp.lt.s32.totalorder %v285, 3
        %vm307 = vcmp.lt.s32.totalorder %v285, 4
        %v308 = vsel %vm304, %v288, %v291
        %v309 = vsel %vm307, %v297, 2102212464
        %v310 = vsel %vm306, %v294, %v309
        %v311 = vsel %vm305, %v308, %v310
        %v312 = vsel %vm304, %v291, %v294
        %v313 = vsel %vm307, %v300, 920167782
        %v314 = vsel %vm306, %v297, %v313
        %v315 = vsel %vm305, %v312, %v314
        %v316 = vsel %vm304, %v294, %v297
        %v317 = vsel %vm307, %v303, 1326507024
        %v318 = vsel %vm306, %v300, %v317
        %v319 = vsel %vm305, %v316, %v318
        %v320 = vshll.u32 %v280, 8
        %v321 = vmul.u32.u64.compose %v320, %v319
        %v322 = vextract.low.u32 %v321
        %v323 = vextract.high.u32 %v321
        %v324 = vmul.u32.u64.compose %v320, %v315
        %v325 = vextract.low.u32 %v324
        %v326 = vextract.high.u32 %v324
        %v327 = vmul.u32 %v320, %v311
        %v328 = vadd.s32 %v323, %v325
        %vm329 = vc.u32 %v323, %v325
        %v330 = vadd.s32 %v326, 1
        %v331 = vsel %vm329, %v330, %v326
        %v332 = vadd.s32 %v327, %v331
        %v333 = vadd.s32 %v332, 536870912
        %v334 = vshrl.u32 %v333, 30
        %v335 = vshll.u32 %v334, 30
        %v336 = vsub.s32 %v332, %v335
        %vm337 = vcmp.lt.s32.totalorder %v336, 0
        %v338 = vsub.s32 0, %v336
        %v339 = vsel %vm337, %v338, %v336
        %v340 = vclz %v339
        %v341 = vsub.s32 %v340, 2
        %vm342 = vcmp.gt.s32.totalorder 0, %v341
        %v343 = vsel %vm342, 0, %v341
        %v344 = vsub.s32 32, %v343
        %v345 = vshll.u32 %v336, %v343
        %v346 = vshrl.u32 %v328, %v344
        %v347 = vor.u32 %v345, %v346
        %v348 = vsub.s32 4294967266, %v343
        %v349 = vadd.s32 %v348, 127
        %v350 = vshll.u32 %v349, 23
        %v351 = vor.u32 4788187, %v350
        %v352 = vand.u32 2147483647, %v351
        %v354 = vcvt.s32.f32 %v347
        %v355 = vmul.f32 %v354, %v352
        %v356 = vxor.u32 %v355, 2147483648
        %v357 = vsel %vm274, %v356, %v355
        %v358 = vsub.s32 4, %v334
        %v359 = vsel %vm274, %v358, %v334
        %v360 = vsel %vm273, %v166, %v357
        %v361 = vsel %vm273, 0, %v359
        %v362 = vcosq.f32.pop %v360
        %v363 = vsinq.f32.pop %v360
        %vm364 = vweird.f32 %v166
        %v365 = vand.u32 %v361, 3
        %vm366 = vcmp.lt.s32.totalorder %v365, 2
        %vm367 = vcmp.eq.s32.totalorder %v365, 0
        %v368 = vxor.u32 %v363, 2147483648
        %v369 = vsel %vm367, %v362, %v368
        %vm370 = vcmp.eq.s32.totalorder %v365, 2
        %v371 = vxor.u32 %v362, 2147483648
        %v372 = vsel %vm370, %v371, %v363
        %v373 = vsel %vm366, %v369, %v372
        %v374 = vsel %vm364, nan, %v373
        %s375 = scalar_lea.vmem %s162, 8 [#allocation7]
        %376 = vst [vmem:[%s375] sm:$0xff] %v374
        %s377 = sand.u32 %s82, 1
        %s378 = scalar_lea.sflag [#allocation6], %s377
        %s379 = sand.u32 %s82, 1
        %s380 = smul.addr %s379, 16
        %s381 = scalar_lea.vmem [#allocation7], %s380
        // Predicated region
        $region29: #{tpu_custom_call.1} parent=23 // pred_check
          %p382 = pneg %p92
        $region30: #{tpu_custom_call.1} parent=23 // pred_check_branch
          %384 = sbr.rel (%p382) target = $region32
        $region31: #{tpu_custom_call.1} parent=23 // pred_region
          %s386 = ssub.s32 256, 256
          %387 = vsyncadd %s378, %s386
          %s388 = sadd.s32 %s29, %s30
          %s389 = smul.addr %s28, 20
          %s390 = sadd.s32 %s388, %s389
          %s391 = smul.addr %s390, 128
          %s392 = scalar_lea.hbm %s2, %s391
          %s393 = sshll.u32 %s381, 4
          %s394 = int_to_ptr.vmem [resolvable:$true] %s393
          %399 = dma.vmem_to_hbm [thread:$0]  %s394, 256, %s392, %s378, 128, 1280, 8
        $region32: #{tpu_custom_call.1} parent=23 // pred_fallthru
          _
      $region24: #{tpu_custom_call.1} parent=5 // pred_fallthru
        _
      %p400 = scmp.le.s32.totalorder 2, %s18
      // Predicated region
      $region33: #{tpu_custom_call.1} parent=5 // pred_check
        %p401 = pneg %p400
      $region34: #{tpu_custom_call.1} parent=5 // pred_check_branch
        %403 = sbr.rel (%p401) target = $region36
      $region35: #{tpu_custom_call.1} parent=5 // pred_region
        %s404 = ssub.s32 %s18, 2
        // Predicated region
        $region37: #{tpu_custom_call.1} parent=35 // pred_check
          %p405 = pneg %p98
        $region38: #{tpu_custom_call.1} parent=35 // pred_check_branch
          %407 = sbr.rel (%p405) target = $region40
        $region39: #{tpu_custom_call.1} parent=35 // pred_region
          %s408 = sand.u32 %s83, 1
          %s409 = scalar_lea.sflag [#allocation6], %s408
          %s410 = sand.u32 %s83, 1
          %s411 = smul.addr %s410, 16
          %s412 = scalar_lea.vmem [#allocation7], %s411
          %413 = dma.done %s409, 256
        $region40: #{tpu_custom_call.1} parent=35 // pred_fallthru
          _
      $region36: #{tpu_custom_call.1} parent=5 // pred_fallthru
        _
    $region6: #{tpu_custom_call.1} parent=1 // loop_footer
      %s22 = sadd.s32 1, %s18
    $region7: #{tpu_custom_call.1} parent=1 // loop_footer_branch
      %17 = sbr.rel target = $region3
    $region8: #{tpu_custom_call.1} parent=1 // loop_exit
      _
    %414 = vsyncpa [#allocation5], 1
    %s415 = scalar_lea.sflag [#allocation5], 1
    %416 = vsyncpa %s415, 1
    %417 = vsyncpa [#allocation6], 1
    %s418 = scalar_lea.sflag [#allocation6], 1
    %419 = vsyncpa %s418, 1

</llo_original>
